<compile_context>
chip_gen: v7x
topology: tpu7x:2x2x1
jax: 0.10.0
libtpu: 0.0.40
codegen_flags: <defaults>
</compile_context>

<pallas_src>
import jax
import jax.numpy as jnp
from jax.experimental import pallas as pl
from jax.experimental.pallas import tpu as pltpu

_EPS = 1e-6  # matches torch.nn.functional.pairwise_distance default eps


def _make_contrastive_kernel(margin, batch, tile_b):
    """Builds a kernel specialized for (margin, true batch size, tile size)."""

    def kernel(o1_ref, o2_ref, label_ref, out_ref):
        # o1_ref, o2_ref: (TB, D) in the input dtype (bf16/f32) in VMEM
        # label_ref:      (TB, 1) float32 in VMEM
        # out_ref:        (1, 8, 128) float32 — lane-dense per-tile partial sum
        i = pl.program_id(0)

        o1 = o1_ref[...].astype(jnp.float32)
        o2 = o2_ref[...].astype(jnp.float32)
        diff = o1 - o2 + _EPS                                   # pairwise_distance adds eps per-component
        sq_sum = jnp.sum(diff * diff, axis=-1, keepdims=True)   # (TB, 1)

        # Mask padded rows of the last (partial) tile before any further math
        # so out-of-bounds garbage can never reach the reduction.
        row = i * tile_b + jax.lax.broadcasted_iota(jnp.int32, (tile_b, 1), 0)
        valid = row < batch
        sq_sum = jnp.where(valid, sq_sum, 0.0)

        dist = jnp.sqrt(sq_sum)                                 # euclidean distance
        label = jnp.where(valid, label_ref[...], 0.0)           # (TB, 1) f32
        hinge = jnp.maximum(margin - dist, 0.0)
        loss = (1.0 - label) * sq_sum + label * (hinge * hinge)  # (TB, 1)
        loss = jnp.where(valid, loss, 0.0)

        partial = jnp.sum(loss)
        # Lane-dense write (full (8,128) tile) — avoids masked vst of a 1-lane block.
        out_ref[...] = jnp.full((1, 8, 128), partial, dtype=jnp.float32)

    return kernel


def contrastive_loss(output1, output2, label, margin=1.0):
    B, D = output1.shape
    label2d = label.astype(jnp.float32).reshape(B, 1)

    itemsize = jnp.dtype(output1.dtype).itemsize
    # Tile so (2 inputs x 2 pipeline buffers x TB x D x itemsize) stays ~<= 8 MiB,
    # comfortably under the scoped-VMEM default on v5e/v6e/v7x.
    budget_bytes = 8 * 1024 * 1024
    tb = budget_bytes // max(1, 4 * D * itemsize)
    tb = max(8, min(1024, (tb // 8) * 8))
    tile_b = B if B <= tb else tb           # single tile if the batch is small
    num_tiles = pl.cdiv(B, tile_b)

    partials = pl.pallas_call(
        _make_contrastive_kernel(float(margin), B, tile_b),
        out_shape=jax.ShapeDtypeStruct((num_tiles, 8, 128), jnp.float32),
        grid=(num_tiles,),
        in_specs=[
            pl.BlockSpec((tile_b, D), lambda i: (i, 0)),
            pl.BlockSpec((tile_b, D), lambda i: (i, 0)),
            pl.BlockSpec((tile_b, 1), lambda i: (i, 0)),
        ],
        out_specs=pl.BlockSpec((1, 8, 128), lambda i: (i, 0, 0)),
        compiler_params=pltpu.CompilerParams(
            dimension_semantics=("parallel",),
        ),
        cost_estimate=pl.CostEstimate(
            flops=3 * B * D + 8 * B,
            transcendentals=B,
            bytes_accessed=2 * B * D * itemsize + 4 * B + num_tiles * 8 * 128 * 4,
        ),
    )(output1, output2, label2d)

    # Tiny epilogue reduction in JAX: sum the per-tile partials, divide by true B.
    return jnp.sum(partials[:, 0, 0]) / B


def _reference_loss(output1, output2, label, margin=1.0):
    # Pure-JAX reference mirroring the PyTorch module.
    diff = output1.astype(jnp.float32) - output2.astype(jnp.float32) + _EPS
    dist = jnp.sqrt(jnp.sum(diff * diff, axis=-1))
    hinge = jnp.maximum(margin - dist, 0.0)
    loss = (1.0 - label) * dist**2 + label * hinge**2
    return jnp.mean(loss)


if __name__ == "__main__":
    key = jax.random.PRNGKey(0)
    k1, k2, k3 = jax.random.split(key, 3)

    B, D = 8, 32
    output1 = jax.random.normal(k1, (B, D), dtype=jnp.float32)
    output2 = jax.random.normal(k2, (B, D), dtype=jnp.float32)
    label = jax.random.bernoulli(k3, 0.5, (B,)).astype(jnp.float32)

    loss = contrastive_loss(output1, output2, label)
    loss = jax.block_until_ready(loss)

    ref = _reference_loss(output1, output2, label)
    assert jnp.allclose(loss, ref, rtol=1e-5, atol=1e-5), (loss, ref)

    print("KERNEL_OK")
</pallas_src>

<mosaic_0001>
module attributes {stable_mosaic.version = 11 : i64} {
  func.func @kernel(%arg0: i32, %arg1: memref<8x32xf32, #tpu.memory_space<vmem>>, %arg2: memref<8x32xf32, #tpu.memory_space<vmem>>, %arg3: memref<8x1xf32, #tpu.memory_space<vmem>>, %arg4: memref<1x8x128xf32, #tpu.memory_space<vmem>>) attributes {dimension_semantics = [#tpu.dimension_semantics<parallel>], iteration_bounds = array<i64: 1>, scalar_prefetch = 0 : i64, scratch_operands = 0 : i64, tpu.core_type = #tpu.core_type<tc>, window_params = [{transform_indices = @transform_0, window_bounds = array<i64: 8, 32>}, {transform_indices = @transform_1, window_bounds = array<i64: 8, 32>}, {transform_indices = @transform_2, window_bounds = array<i64: 8, 1>}, {transform_indices = @transform_3, window_bounds = array<i64: 1, 8, 128>}]} {
    %c0 = arith.constant 0 : index
    %c0_0 = arith.constant 0 : index
    %0 = vector.load %arg1[%c0, %c0_0] : memref<8x32xf32, #tpu.memory_space<vmem>>, vector<8x32xf32>
    %c0_1 = arith.constant 0 : index
    %c0_2 = arith.constant 0 : index
    %1 = vector.load %arg2[%c0_1, %c0_2] : memref<8x32xf32, #tpu.memory_space<vmem>>, vector<8x32xf32>
    %2 = arith.subf %0, %1 : vector<8x32xf32>
    %cst = arith.constant 9.99999997E-7 : f32
    %3 = vector.broadcast %cst : f32 to vector<8x32xf32>
    %4 = arith.addf %2, %3 : vector<8x32xf32>
    %5 = arith.mulf %4, %4 : vector<8x32xf32>
    %cst_3 = arith.constant dense<0.000000e+00> : vector<8xf32>
    %6 = vector.multi_reduction <add>, %5, %cst_3 [1] : vector<8x32xf32> to vector<8xf32>
    %7 = vector.shape_cast %6 : vector<8xf32> to vector<8x1xf32>
    %c8_i32 = arith.constant 8 : i32
    %8 = arith.muli %arg0, %c8_i32 : i32
    %9 = tpu.iota {dimensions = array<i32: 0>} : vector<8x1xi32>
    %10 = vector.broadcast %8 : i32 to vector<8x1xi32>
    %11 = arith.addi %10, %9 : vector<8x1xi32>
    %c8_i32_4 = arith.constant 8 : i32
    %12 = vector.broadcast %c8_i32_4 : i32 to vector<8x1xi32>
    %13 = arith.cmpi slt, %11, %12 : vector<8x1xi32>
    %cst_5 = arith.constant 0.000000e+00 : f32
    %14 = vector.broadcast %cst_5 : f32 to vector<8x1xf32>
    %15 = arith.select %13, %7, %14 : vector<8x1xi1>, vector<8x1xf32>
    %16 = math.sqrt %15 : vector<8x1xf32>
    %c0_6 = arith.constant 0 : index
    %c0_7 = arith.constant 0 : index
    %17 = vector.load %arg3[%c0_6, %c0_7] : memref<8x1xf32, #tpu.memory_space<vmem>>, vector<8x1xf32>
    %cst_8 = arith.constant 0.000000e+00 : f32
    %18 = vector.broadcast %cst_8 : f32 to vector<8x1xf32>
    %19 = arith.select %13, %17, %18 : vector<8x1xi1>, vector<8x1xf32>
    %cst_9 = arith.constant 1.000000e+00 : f32
    %20 = vector.broadcast %cst_9 : f32 to vector<8x1xf32>
    %21 = arith.subf %20, %16 : vector<8x1xf32>
    %cst_10 = arith.constant 0.000000e+00 : f32
    %22 = vector.broadcast %cst_10 : f32 to vector<8x1xf32>
    %23 = arith.maximumf %21, %22 : vector<8x1xf32>
    %cst_11 = arith.constant 1.000000e+00 : f32
    %24 = vector.broadcast %cst_11 : f32 to vector<8x1xf32>
    %25 = arith.subf %24, %19 : vector<8x1xf32>
    %26 = arith.mulf %25, %15 : vector<8x1xf32>
    %27 = arith.mulf %23, %23 : vector<8x1xf32>
    %28 = arith.mulf %19, %27 : vector<8x1xf32>
    %29 = arith.addf %26, %28 : vector<8x1xf32>
    %cst_12 = arith.constant 0.000000e+00 : f32
    %30 = vector.broadcast %cst_12 : f32 to vector<8x1xf32>
    %31 = arith.select %13, %29, %30 : vector<8x1xi1>, vector<8x1xf32>
    %32 = vector.shape_cast %31 : vector<8x1xf32> to vector<1x8x1xf32>
    %cst_13 = arith.constant dense<0.000000e+00> : vector<1xf32>
    %33 = vector.multi_reduction <add>, %32, %cst_13 [1, 2] : vector<1x8x1xf32> to vector<1xf32>
    %34 = vector.shape_cast %33 : vector<1xf32> to vector<1x1x1xf32>
    %35 = vector.extract %34[0, 0, 0] : f32 from vector<1x1x1xf32>
    %36 = vector.broadcast %35 : f32 to vector<1x8x128xf32>
    %c0_14 = arith.constant 0 : index
    %c0_15 = arith.constant 0 : index
    %c0_16 = arith.constant 0 : index
    %37 = vector.load %arg4[%c0_14, %c0_15, %c0_16] : memref<1x8x128xf32, #tpu.memory_space<vmem>>, vector<1x8x128xf32>
    tpu.vector_store %arg4[%c0_14, %c0_15, %c0_16], %36 {strides = array<i32>} : memref<1x8x128xf32, #tpu.memory_space<vmem>>, vector<1x8x128xf32>,
    return
  }
  func.func @transform_0(%arg0: i32) -> (i32, i32) {
    %c0_i32 = arith.constant 0 : i32
    %c0_i32_0 = arith.constant 0 : i32
    return %arg0, %c0_i32 : i32, i32
  }
  func.func @transform_1(%arg0: i32) -> (i32, i32) {
    %c0_i32 = arith.constant 0 : i32
    %c0_i32_0 = arith.constant 0 : i32
    return %arg0, %c0_i32 : i32, i32
  }
  func.func @transform_2(%arg0: i32) -> (i32, i32) {
    %c0_i32 = arith.constant 0 : i32
    %c0_i32_0 = arith.constant 0 : i32
    return %arg0, %c0_i32 : i32, i32
  }
  func.func @transform_3(%arg0: i32) -> (i32, i32, i32) {
    %c0_i32 = arith.constant 0 : i32
    %c0_i32_0 = arith.constant 0 : i32
    %c0_i32_1 = arith.constant 0 : i32
    return %arg0, %c0_i32, %c0_i32_0 : i32, i32, i32
  }
}

</mosaic_0001>

<llo_original>
// kernel: tpu_custom_call.1
$region0: #{tpu_custom_call.1}
  #allocation0 [shape = 'u32[]', space=smem, size = 0x4, offset = 0x4, fixed_abs, tag = 'smem constant byte address 0x4 - core index']
  #allocation1 [shape = 'u32[144,128]{1,0:T(1,128)}', space=vmem, size = 0x12000, scoped, tag = 'internal scratch']
  %s0 = inlined_call_operand.vmem [shape: f32[8,32], index: 0, kind: input, shape index: {}]
  %s1 = inlined_call_operand.hbm [shape: f32[8,32], index: 1, kind: input, shape index: {}]
  %s2 = inlined_call_operand.vmem [shape: f32[8,1], index: 2, kind: input, shape index: {}]
  %s3 = inlined_call_operand.hbm [shape: f32[1,8,128], index: 3, kind: output, shape index: {}]
  %s4 = sld [smem:[#allocation0]]
  $region26: #{tpu_custom_call.1} parent=0
    _
  %s6 = ssub.s32 1, %s4
  %s7 = scalar_select 0, %s6, %s4
  $region1: #{tpu_custom_call.1} parent=0
    #allocation2 [shape = 'u8[4096]{0}', space=vmem, size = 0x1000, scoped, tag = 'input window, operand 1, single buffered']
    #allocation3 [shape = 's32[1]{0}', space=sflag, size = 0x4, scoped, tag = 'scoped memory for tpu_custom_call.1']
    #allocation4 [shape = 's32[1]{0}', space=sflag, size = 0x4, scoped, tag = 'scoped memory for tpu_custom_call.1']
    #allocation5 [shape = 'u8[4096]{0}', space=vmem, size = 0x1000, scoped, tag = 'output window, operand 0, single buffered']
    %8 = vsyncpa [#allocation3], 0
    %9 = vsyncpa [#allocation4], 0
    // Predicated region
    $region2: #{tpu_custom_call.1} parent=1 // pred_check
      _
    $region3: #{tpu_custom_call.1} parent=1 // pred_check_branch
      %11 = sbr.rel (0) target = $region5
    $region4: #{tpu_custom_call.1} parent=1 // pred_region
      _
    $region5: #{tpu_custom_call.1} parent=1 // pred_fallthru
      _
    // Predicated region
    $region6: #{tpu_custom_call.1} parent=1 // pred_check
      _
    $region7: #{tpu_custom_call.1} parent=1 // pred_check_branch
      %13 = sbr.rel (0) target = $region9
    $region8: #{tpu_custom_call.1} parent=1 // pred_region
      %s15 = ssub.s32 128, 128
      %16 = vsyncadd [#allocation3], %s15
      %s18 = sshll.u32 [#allocation2], 4
      %s19 = int_to_ptr.vmem [resolvable:$true] %s18
      %21 = dma.hbm_to_vmem [thread:$0]  %s1, 128, %s19, [#allocation3]
    $region9: #{tpu_custom_call.1} parent=1 // pred_fallthru
      _
    // Predicated region
    $region10: #{tpu_custom_call.1} parent=1 // pred_check
      _
    $region11: #{tpu_custom_call.1} parent=1 // pred_check_branch
      %23 = sbr.rel (0) target = $region13
    $region12: #{tpu_custom_call.1} parent=1 // pred_region
      _
    $region13: #{tpu_custom_call.1} parent=1 // pred_fallthru
      _
    // Predicated region
    $region14: #{tpu_custom_call.1} parent=1 // pred_check
      _
    $region15: #{tpu_custom_call.1} parent=1 // pred_check_branch
      %25 = sbr.rel (0) target = $region17
    $region16: #{tpu_custom_call.1} parent=1 // pred_region
      %26 = dma.done [#allocation3], 128
    $region17: #{tpu_custom_call.1} parent=1 // pred_fallthru
      _
    %v27 = vld [vmem:[%s0] sm:$0xff]
    %v28 = vld [vmem:[#allocation2] sm:$0xff]
    %v29 = vsub.f32 %v27, %v28
    %v30 = vadd.f32 %v29, 1e-06
    %v31 = vmul.f32 %v30, %v30
    %vm32 = vcmask 261120
    %v33 = vsel %vm32, %v31, 0.0
    %34 = vadd.xlane.f32.xlu0 %v33
    %v35 = vpop.xlane.xlu0 %34
    %s36 = smul.u32 0, 8
    %v37 = vlaneseq
    %v38 = vshrl.u32 %v37, 7
    %v39 = vstv %s36
    %v40 = vadd.s32 %v39, %v38
    %vm41 = vcmp.lt.s32.totalorder %v40, 8
    %v42 = vsel %vm41, %v35, 0.0
    %v43 = vrsqrt.pop %v42
    %v44 = vmul.f32 %v42, %v43
    %vm45 = vcmp.eq.f32.partialorder %v42, inf
    %v46 = vsel %vm45, %v42, %v44
    %vm47 = vcmp.eq.f32.partialorder %v42, 0.0
    %v48 = vand.u32 %v42, 2147483648
    %v49 = vsel %vm47, %v48, %v46
    %v50 = vld [vmem:[%s2] sm:$0xff]
    %v51 = vsel %vm41, %v50, 0.0
    %v52 = vsub.f32 1.0, %v49
    %v53 = vmax.f32 %v52, 0.0
    %v54 = vsub.f32 1.0, %v51
    %v55 = vmul.f32 %v54, %v42
    %v56 = vmul.f32 %v53, %v53
    %v57 = vmul.f32 %v51, %v56
    %v58 = vadd.f32 %v55, %v57
    %v59 = vsel %vm41, %v58, 0.0
    %vm60 = vcmask 7168
    %v61 = vsel %vm60, %v59, 0.0
    %62 = vadd.xlane.f32.xlu0 %v61
    %v63 = vpop.xlane.xlu0 %62
    %v64 = vrot.slane %v63, 4
    %v65 = vadd.f32 %v63, %v64
    %v66 = vrot.slane %v65, 2
    %v67 = vadd.f32 %v65, %v66
    %v68 = vrot.slane %v67, 1
    %v69 = vadd.f32 %v67, %v68
    %s70 = vtos %v69
    %v71 = vstv %s70
    %72 = vst [vmem:[#allocation5] sm:$0xff] %v71
    // Predicated region
    $region18: #{tpu_custom_call.1} parent=1 // pred_check
      _
    $region19: #{tpu_custom_call.1} parent=1 // pred_check_branch
      %74 = sbr.rel (0) target = $region21
    $region20: #{tpu_custom_call.1} parent=1 // pred_region
      %s76 = ssub.s32 128, 128
      %77 = vsyncadd [#allocation4], %s76
      %s79 = sshll.u32 [#allocation5], 4
      %s80 = int_to_ptr.vmem [resolvable:$true] %s79
      %82 = dma.vmem_to_hbm [thread:$0]  %s80, 128, %s3, [#allocation4]
    $region21: #{tpu_custom_call.1} parent=1 // pred_fallthru
      _
    // Predicated region
    $region22: #{tpu_custom_call.1} parent=1 // pred_check
      _
    $region23: #{tpu_custom_call.1} parent=1 // pred_check_branch
      %84 = sbr.rel (0) target = $region25
    $region24: #{tpu_custom_call.1} parent=1 // pred_region
      %85 = dma.done [#allocation4], 128
    $region25: #{tpu_custom_call.1} parent=1 // pred_fallthru
      _
    %86 = vsyncpa [#allocation3], 1
    %87 = vsyncpa [#allocation4], 1

</llo_original>
